<compile_context>
chip_gen: v6e
topology: v6e:2x2x1
jax: 0.10.0
libtpu: 0.0.40
codegen_flags: <defaults>
</compile_context>

<pallas_src>
import functools

import jax
import jax.numpy as jnp
import numpy as np
from jax.experimental import pallas as pl
from jax.experimental.pallas import tpu as pltpu


# ----------------------------------------------------------------------------
# Fused Pallas kernel:  conv1+BN1+ReLU  ->  (VMEM)  ->  conv2+BN2+ReLU
# ----------------------------------------------------------------------------
def _make_fused_kernel(H, W, K, dila, cin, cout, pad):
    WCo = W * cout

    def kernel(x_ref, w1_ref, b1_ref, w2_ref, b2_ref, o_ref, y_pad_ref):
        # x_ref:     (1, H+2p, W*Cin)     H-padded, lane-flattened input (bf16)
        # w1_ref:    (K, W*Cin, W*Cout)   conv1 banded weights, BN1 scale folded (bf16)
        # b1_ref:    (1, W*Cout)          BN1 shift tiled over W (f32)
        # w2_ref:    (K, W*Cout, W*Cout)  conv2 banded weights, BN2 scale folded (bf16)
        # b2_ref:    (1, W*Cout)          BN2 shift tiled over W (f32)
        # o_ref:     (1, H, W*Cout)       lane-dense output (f32)
        # y_pad_ref: (H+2p, W*Cout)       VMEM scratch, H-padded intermediate (bf16)

        # ---- conv1: K row-taps, each ONE (H, W*Cin) @ (W*Cin, W*Cout) dot ----
        acc = jnp.zeros((H, WCo), jnp.float32)
        for ky in range(K):
            acc = acc + jnp.dot(
                x_ref[0, ky * dila:ky * dila + H, :], w1_ref[ky],
                preferred_element_type=jnp.float32)
        y = jnp.maximum(acc + b1_ref[...], 0.0)        # BN1 (folded) + ReLU, f32

        # ---- stage H-padded intermediate in VMEM (never touches HBM) ---------
        y_pad_ref[...] = jnp.zeros_like(y_pad_ref)     # zero top/bottom borders
        y_pad_ref[pad:pad + H, :] = y.astype(y_pad_ref.dtype)

        # ---- conv2: same K row-tap structure over the VMEM intermediate ------
        acc2 = jnp.zeros((H, WCo), jnp.float32)
        for ky in range(K):
            acc2 = acc2 + jnp.dot(
                y_pad_ref[ky * dila:ky * dila + H, :], w2_ref[ky],
                preferred_element_type=jnp.float32)

        # ---- BN2 (folded) + ReLU, lane-dense store ---------------------------
        o_ref[0] = jnp.maximum(acc2 + b2_ref[...], 0.0).astype(o_ref.dtype)

    return kernel


# ----------------------------------------------------------------------------
# Glue: BN folding + banded-weight construction (wrapper side, done once)
# ----------------------------------------------------------------------------
def fold_bn(gamma, beta, running_mean, running_var, eps=1e-5):
    scale = gamma / jnp.sqrt(running_var + eps)
    shift = beta - running_mean * scale
    return scale, shift


def _w_selection(W, K, pad, dila, stride=1):
    """sel[kx, w_in, w_out] = 1 iff output column w_out reads input column w_in
    through horizontal tap kx (zero padding in W handled by dropping OOB taps)."""
    sel = np.zeros((K, W, W), np.float32)
    for kx in range(K):
        for wo in range(W):
            wi = wo * stride - pad + kx * dila
            if 0 <= wi < W:
                sel[kx, wi, wo] = 1.0
    return sel


def banded_weight(w_oihw, scale, W, pad, dila):
    """PyTorch conv weight [Cout,Cin,K,K] (BN scale folded) -> per-row-tap
    banded matmul weights [K, W*Cin, W*Cout] for the lane-flattened layout."""
    cout, cin, K, _ = w_oihw.shape
    wfold = jnp.transpose(w_oihw * scale[:, None, None, None], (2, 3, 1, 0))  # (ky,kx,ci,co)
    sel = _w_selection(W, K, pad, dila)                                        # (kx,wi,wo)
    big = jnp.einsum('xiw,yxcd->yicwd', sel, wfold)                            # (ky,wi,ci,wo,co)
    return big.reshape(K, W * cin, W * cout)


def basic_conv_forward(x_nchw, params, *, k, stride, dila):
    """Full BasicConv forward (conv-BN-ReLU-conv-BN-ReLU), one fused kernel."""
    if stride != 1:
        # TODO(synk): strided convs not implemented in the fused banded-matmul path.
        raise NotImplementedError("fused BasicConv kernel supports stride=1 only")

    pad = (k - 1) * dila // 2
    assert (k - 1) * dila == 2 * pad, "only 'same' (odd receptive field) convs supported"
    N, cin, H, W = x_nchw.shape
    Hp = H + 2 * pad

    s1, b1 = fold_bn(*params["bn1"])
    s2, b2 = fold_bn(*params["bn2"])
    cout = params["w1"].shape[0]

    w1 = banded_weight(params["w1"], s1, W, pad, dila)          # (K, W*Cin,  W*Cout)
    w2 = banded_weight(params["w2"], s2, W, pad, dila)          # (K, W*Cout, W*Cout)
    b1t = jnp.tile(b1, W).reshape(1, W * cout)                  # shift[co] at wo*Cout+co
    b2t = jnp.tile(b2, W).reshape(1, W * cout)

    x = jnp.transpose(x_nchw, (0, 2, 3, 1))                     # NCHW -> NHWC
    xp = jnp.pad(x, ((0, 0), (pad, pad), (0, 0), (0, 0)))       # pad H only
    xp = xp.reshape(N, Hp, W * cin)                             # lane-flatten W*Cin

    kernel = _make_fused_kernel(H, W, k, dila, cin, cout, pad)

    out = pl.pallas_call(
        kernel,
        out_shape=jax.ShapeDtypeStruct((N, H, W * cout), jnp.float32),
        grid_spec=pltpu.PrefetchScalarGridSpec(
            num_scalar_prefetch=0,
            grid=(N,),
            in_specs=[
                pl.BlockSpec((1, Hp, W * cin), lambda n: (n, 0, 0)),
                pl.BlockSpec((k, W * cin, W * cout), lambda n: (0, 0, 0)),
                pl.BlockSpec((1, W * cout), lambda n: (0, 0)),
                pl.BlockSpec((k, W * cout, W * cout), lambda n: (0, 0, 0)),
                pl.BlockSpec((1, W * cout), lambda n: (0, 0)),
            ],
            out_specs=pl.BlockSpec((1, H, W * cout), lambda n: (n, 0, 0)),
            scratch_shapes=[pltpu.VMEM((Hp, W * cout), jnp.bfloat16)],
        ),
        compiler_params=pltpu.CompilerParams(
            dimension_semantics=("parallel",)),
    )(
        xp.astype(jnp.bfloat16),
        w1.astype(jnp.bfloat16),
        b1t.astype(jnp.float32),
        w2.astype(jnp.bfloat16),
        b2t.astype(jnp.float32),
    )

    out = out.reshape(N, H, W, cout)
    return jnp.transpose(out, (0, 3, 1, 2))                     # NHWC -> NCHW


# ----------------------------------------------------------------------------
# Pure-JAX f32 reference (for correctness check)
# ----------------------------------------------------------------------------
def reference_forward(x_nchw, params, *, k, stride, dila):
    pad = (k - 1) * dila // 2

    def conv(x, w_oihw):
        w_hwio = jnp.transpose(w_oihw, (2, 3, 1, 0))
        return jax.lax.conv_general_dilated(
            x, w_hwio, window_strides=(stride, stride),
            padding=[(pad, pad), (pad, pad)],
            rhs_dilation=(dila, dila),
            dimension_numbers=("NHWC", "HWIO", "NHWC"))

    x = jnp.transpose(x_nchw, (0, 2, 3, 1))
    s1, b1 = fold_bn(*params["bn1"])
    s2, b2 = fold_bn(*params["bn2"])
    y = jnp.maximum(conv(x, params["w1"]) * s1 + b1, 0.0)
    z = jnp.maximum(conv(y, params["w2"]) * s2 + b2, 0.0)
    return jnp.transpose(z, (0, 3, 1, 2))


# ----------------------------------------------------------------------------
# main
# ----------------------------------------------------------------------------
if __name__ == "__main__":
    # BasicConv(in_channel=4, out_channel=8, kernel_size=3, stride=1)
    IN_CH, OUT_CH, K, STRIDE, DILA = 4, 8, 3, 1, 1
    N, H, W = 2, 16, 16

    key = jax.random.PRNGKey(0)
    k_x, k_w1, k_w2, k_g1, k_b1, k_m1, k_v1, k_g2, k_b2, k_m2, k_v2 = (
        jax.random.split(key, 11))

    x = jax.random.normal(k_x, (N, IN_CH, H, W), dtype=jnp.float32)

    params = {
        "w1": 0.1 * jax.random.normal(k_w1, (OUT_CH, IN_CH, K, K), jnp.float32),
        "w2": 0.1 * jax.random.normal(k_w2, (OUT_CH, OUT_CH, K, K), jnp.float32),
        "bn1": (
            1.0 + 0.1 * jax.random.normal(k_g1, (OUT_CH,), jnp.float32),   # gamma
            0.1 * jax.random.normal(k_b1, (OUT_CH,), jnp.float32),         # beta
            0.05 * jax.random.normal(k_m1, (OUT_CH,), jnp.float32),        # running_mean
            1.0 + 0.1 * jnp.abs(jax.random.normal(k_v1, (OUT_CH,), jnp.float32)),  # running_var
        ),
        "bn2": (
            1.0 + 0.1 * jax.random.normal(k_g2, (OUT_CH,), jnp.float32),
            0.1 * jax.random.normal(k_b2, (OUT_CH,), jnp.float32),
            0.05 * jax.random.normal(k_m2, (OUT_CH,), jnp.float32),
            1.0 + 0.1 * jnp.abs(jax.random.normal(k_v2, (OUT_CH,), jnp.float32)),
        ),
    }

    fwd = jax.jit(functools.partial(basic_conv_forward, k=K, stride=STRIDE, dila=DILA))
    out = jax.block_until_ready(fwd(x, params))

    ref = jax.block_until_ready(
        reference_forward(x, params, k=K, stride=STRIDE, dila=DILA))

    assert out.shape == (N, OUT_CH, H, W), out.shape
    # Tolerance loosened vs pure-f32 because conv operands are fed to the MXU
    # in bfloat16 (accumulation and epilogue remain f32).
    np.testing.assert_allclose(np.asarray(out), np.asarray(ref),
                               rtol=5e-2, atol=5e-2)
    print("KERNEL_OK")
</pallas_src>

<mosaic_0001>
module attributes {stable_mosaic.version = 11 : i64} {
  func.func @kernel(%arg0: i32, %arg1: memref<1x18x64xbf16, #tpu.memory_space<vmem>>, %arg2: memref<3x64x128xbf16, #tpu.memory_space<vmem>>, %arg3: memref<1x128xf32, #tpu.memory_space<vmem>>, %arg4: memref<3x128x128xbf16, #tpu.memory_space<vmem>>, %arg5: memref<1x128xf32, #tpu.memory_space<vmem>>, %arg6: memref<1x16x128xf32, #tpu.memory_space<vmem>>, %arg7: memref<18x128xbf16, #tpu.memory_space<vmem>>) attributes {dimension_semantics = [#tpu.dimension_semantics<parallel>], iteration_bounds = array<i64: 2>, scalar_prefetch = 0 : i64, scratch_operands = 1 : i64, tpu.core_type = #tpu.core_type<tc>, window_params = [{transform_indices = @transform_0, window_bounds = array<i64: 1, 18, 64>}, {pipeline_mode = #tpu.pipeline_mode<synchronous>, transform_indices = @transform_1, window_bounds = array<i64: 3, 64, 128>}, {pipeline_mode = #tpu.pipeline_mode<synchronous>, transform_indices = @transform_2, window_bounds = array<i64: 1, 128>}, {pipeline_mode = #tpu.pipeline_mode<synchronous>, transform_indices = @transform_3, window_bounds = array<i64: 3, 128, 128>}, {pipeline_mode = #tpu.pipeline_mode<synchronous>, transform_indices = @transform_4, window_bounds = array<i64: 1, 128>}, {transform_indices = @transform_5, window_bounds = array<i64: 1, 16, 128>}]} {
    %cst = arith.constant 0.000000e+00 : f32
    %0 = vector.broadcast %cst : f32 to vector<16x128xf32>
    %c0 = arith.constant 0 : index
    %c0_0 = arith.constant 0 : index
    %c0_1 = arith.constant 0 : index
    %1 = vector.load %arg1[%c0, %c0_0, %c0_1] : memref<1x18x64xbf16, #tpu.memory_space<vmem>>, vector<1x16x64xbf16>
    %2 = vector.shape_cast %1 : vector<1x16x64xbf16> to vector<16x64xbf16>
    %c0_2 = arith.constant 0 : index
    %c0_3 = arith.constant 0 : index
    %c0_4 = arith.constant 0 : index
    %3 = vector.load %arg2[%c0_2, %c0_3, %c0_4] : memref<3x64x128xbf16, #tpu.memory_space<vmem>>, vector<1x64x128xbf16>
    %4 = vector.shape_cast %3 : vector<1x64x128xbf16> to vector<64x128xbf16>
    %cst_5 = arith.constant dense<0.000000e+00> : vector<16x128xf32>
    %5 = tpu.matmul %2, %4, %cst_5 {dimension_numbers = #tpu.dot_dimension_numbers<[1], [0], [0], [1], [0, 0, 1, 1], [], []>} : vector<16x64xbf16>, vector<64x128xbf16>, vector<16x128xf32> -> vector<16x128xf32>
    %6 = arith.addf %0, %5 : vector<16x128xf32>
    %c0_6 = arith.constant 0 : index
    %c1 = arith.constant 1 : index
    %c0_7 = arith.constant 0 : index
    %7 = vector.load %arg1[%c0_6, %c1, %c0_7] : memref<1x18x64xbf16, #tpu.memory_space<vmem>>, vector<1x16x64xbf16>
    %8 = vector.shape_cast %7 : vector<1x16x64xbf16> to vector<16x64xbf16>
    %c1_8 = arith.constant 1 : index
    %c0_9 = arith.constant 0 : index
    %c0_10 = arith.constant 0 : index
    %9 = vector.load %arg2[%c1_8, %c0_9, %c0_10] : memref<3x64x128xbf16, #tpu.memory_space<vmem>>, vector<1x64x128xbf16>
    %10 = vector.shape_cast %9 : vector<1x64x128xbf16> to vector<64x128xbf16>
    %cst_11 = arith.constant dense<0.000000e+00> : vector<16x128xf32>
    %11 = tpu.matmul %8, %10, %cst_11 {dimension_numbers = #tpu.dot_dimension_numbers<[1], [0], [0], [1], [0, 0, 1, 1], [], []>} : vector<16x64xbf16>, vector<64x128xbf16>, vector<16x128xf32> -> vector<16x128xf32>
    %12 = arith.addf %6, %11 : vector<16x128xf32>
    %c0_12 = arith.constant 0 : index
    %c2 = arith.constant 2 : index
    %c0_13 = arith.constant 0 : index
    %13 = vector.load %arg1[%c0_12, %c2, %c0_13] : memref<1x18x64xbf16, #tpu.memory_space<vmem>>, vector<1x16x64xbf16>
    %14 = vector.shape_cast %13 : vector<1x16x64xbf16> to vector<16x64xbf16>
    %c2_14 = arith.constant 2 : index
    %c0_15 = arith.constant 0 : index
    %c0_16 = arith.constant 0 : index
    %15 = vector.load %arg2[%c2_14, %c0_15, %c0_16] : memref<3x64x128xbf16, #tpu.memory_space<vmem>>, vector<1x64x128xbf16>
    %16 = vector.shape_cast %15 : vector<1x64x128xbf16> to vector<64x128xbf16>
    %cst_17 = arith.constant dense<0.000000e+00> : vector<16x128xf32>
    %17 = tpu.matmul %14, %16, %cst_17 {dimension_numbers = #tpu.dot_dimension_numbers<[1], [0], [0], [1], [0, 0, 1, 1], [], []>} : vector<16x64xbf16>, vector<64x128xbf16>, vector<16x128xf32> -> vector<16x128xf32>
    %18 = arith.addf %12, %17 : vector<16x128xf32>
    %c0_18 = arith.constant 0 : index
    %c0_19 = arith.constant 0 : index
    %19 = vector.load %arg3[%c0_18, %c0_19] : memref<1x128xf32, #tpu.memory_space<vmem>>, vector<1x128xf32>
    %20 = vector.broadcast %19 : vector<1x128xf32> to vector<16x128xf32>
    %21 = arith.addf %18, %20 : vector<16x128xf32>
    %cst_20 = arith.constant 0.000000e+00 : f32
    %22 = vector.broadcast %cst_20 : f32 to vector<16x128xf32>
    %23 = arith.maximumf %21, %22 : vector<16x128xf32>
    %cst_21 = arith.constant 0.000000e+00 : bf16
    %24 = vector.broadcast %cst_21 : bf16 to vector<18x128xbf16>
    %c0_22 = arith.constant 0 : index
    %c0_23 = arith.constant 0 : index
    %25 = vector.load %arg7[%c0_22, %c0_23] : memref<18x128xbf16, #tpu.memory_space<vmem>>, vector<18x128xbf16>
    tpu.vector_store %arg7[%c0_22, %c0_23], %24 {strides = array<i32>} : memref<18x128xbf16, #tpu.memory_space<vmem>>, vector<18x128xbf16>,
    %26 = arith.truncf %23 : vector<16x128xf32> to vector<16x128xbf16>
    %c1_24 = arith.constant 1 : index
    %c0_25 = arith.constant 0 : index
    %27 = vector.load %arg7[%c1_24, %c0_25] : memref<18x128xbf16, #tpu.memory_space<vmem>>, vector<16x128xbf16>
    tpu.vector_store %arg7[%c1_24, %c0_25], %26 {strides = array<i32>} : memref<18x128xbf16, #tpu.memory_space<vmem>>, vector<16x128xbf16>,
    %cst_26 = arith.constant 0.000000e+00 : f32
    %28 = vector.broadcast %cst_26 : f32 to vector<16x128xf32>
    %c0_27 = arith.constant 0 : index
    %c0_28 = arith.constant 0 : index
    %29 = vector.load %arg7[%c0_27, %c0_28] : memref<18x128xbf16, #tpu.memory_space<vmem>>, vector<16x128xbf16>
    %c0_29 = arith.constant 0 : index
    %c0_30 = arith.constant 0 : index
    %c0_31 = arith.constant 0 : index
    %30 = vector.load %arg4[%c0_29, %c0_30, %c0_31] : memref<3x128x128xbf16, #tpu.memory_space<vmem>>, vector<1x128x128xbf16>
    %31 = vector.shape_cast %30 : vector<1x128x128xbf16> to vector<128x128xbf16>
    %cst_32 = arith.constant dense<0.000000e+00> : vector<16x128xf32>
    %32 = tpu.matmul %29, %31, %cst_32 {dimension_numbers = #tpu.dot_dimension_numbers<[1], [0], [0], [1], [0, 0, 1, 1], [], []>} : vector<16x128xbf16>, vector<128x128xbf16>, vector<16x128xf32> -> vector<16x128xf32>
    %33 = arith.addf %28, %32 : vector<16x128xf32>
    %c1_33 = arith.constant 1 : index
    %c0_34 = arith.constant 0 : index
    %34 = vector.load %arg7[%c1_33, %c0_34] : memref<18x128xbf16, #tpu.memory_space<vmem>>, vector<16x128xbf16>
    %c1_35 = arith.constant 1 : index
    %c0_36 = arith.constant 0 : index
    %c0_37 = arith.constant 0 : index
    %35 = vector.load %arg4[%c1_35, %c0_36, %c0_37] : memref<3x128x128xbf16, #tpu.memory_space<vmem>>, vector<1x128x128xbf16>
    %36 = vector.shape_cast %35 : vector<1x128x128xbf16> to vector<128x128xbf16>
    %cst_38 = arith.constant dense<0.000000e+00> : vector<16x128xf32>
    %37 = tpu.matmul %34, %36, %cst_38 {dimension_numbers = #tpu.dot_dimension_numbers<[1], [0], [0], [1], [0, 0, 1, 1], [], []>} : vector<16x128xbf16>, vector<128x128xbf16>, vector<16x128xf32> -> vector<16x128xf32>
    %38 = arith.addf %33, %37 : vector<16x128xf32>
    %c2_39 = arith.constant 2 : index
    %c0_40 = arith.constant 0 : index
    %39 = vector.load %arg7[%c2_39, %c0_40] : memref<18x128xbf16, #tpu.memory_space<vmem>>, vector<16x128xbf16>
    %c2_41 = arith.constant 2 : index
    %c0_42 = arith.constant 0 : index
    %c0_43 = arith.constant 0 : index
    %40 = vector.load %arg4[%c2_41, %c0_42, %c0_43] : memref<3x128x128xbf16, #tpu.memory_space<vmem>>, vector<1x128x128xbf16>
    %41 = vector.shape_cast %40 : vector<1x128x128xbf16> to vector<128x128xbf16>
    %cst_44 = arith.constant dense<0.000000e+00> : vector<16x128xf32>
    %42 = tpu.matmul %39, %41, %cst_44 {dimension_numbers = #tpu.dot_dimension_numbers<[1], [0], [0], [1], [0, 0, 1, 1], [], []>} : vector<16x128xbf16>, vector<128x128xbf16>, vector<16x128xf32> -> vector<16x128xf32>
    %43 = arith.addf %38, %42 : vector<16x128xf32>
    %c0_45 = arith.constant 0 : index
    %c0_46 = arith.constant 0 : index
    %44 = vector.load %arg5[%c0_45, %c0_46] : memref<1x128xf32, #tpu.memory_space<vmem>>, vector<1x128xf32>
    %45 = vector.broadcast %44 : vector<1x128xf32> to vector<16x128xf32>
    %46 = arith.addf %43, %45 : vector<16x128xf32>
    %cst_47 = arith.constant 0.000000e+00 : f32
    %47 = vector.broadcast %cst_47 : f32 to vector<16x128xf32>
    %48 = arith.maximumf %46, %47 : vector<16x128xf32>
    %c0_48 = arith.constant 0 : index
    %c0_49 = arith.constant 0 : index
    %c0_50 = arith.constant 0 : index
    %49 = vector.load %arg6[%c0_48, %c0_49, %c0_50] : memref<1x16x128xf32, #tpu.memory_space<vmem>>, vector<1x16x128xf32>
    %50 = vector.shape_cast %49 : vector<1x16x128xf32> to vector<16x128xf32>
    %51 = vector.shape_cast %48 : vector<16x128xf32> to vector<1x16x128xf32>
    tpu.vector_store %arg6[%c0_48, %c0_49, %c0_50], %51 {strides = array<i32>} : memref<1x16x128xf32, #tpu.memory_space<vmem>>, vector<1x16x128xf32>,
    return
  }
  func.func @transform_0(%arg0: i32) -> (i32, i32, i32) {
    %c0_i32 = arith.constant 0 : i32
    %c0_i32_0 = arith.constant 0 : i32
    %c0_i32_1 = arith.constant 0 : i32
    return %arg0, %c0_i32, %c0_i32_0 : i32, i32, i32
  }
  func.func @transform_1(%arg0: i32) -> (i32, i32, i32) {
    %c0_i32 = arith.constant 0 : i32
    %c0_i32_0 = arith.constant 0 : i32
    %c0_i32_1 = arith.constant 0 : i32
    %c0_i32_2 = arith.constant 0 : i32
    return %c0_i32, %c0_i32_0, %c0_i32_1 : i32, i32, i32
  }
  func.func @transform_2(%arg0: i32) -> (i32, i32) {
    %c0_i32 = arith.constant 0 : i32
    %c0_i32_0 = arith.constant 0 : i32
    %c0_i32_1 = arith.constant 0 : i32
    return %c0_i32, %c0_i32_0 : i32, i32
  }
  func.func @transform_3(%arg0: i32) -> (i32, i32, i32) {
    %c0_i32 = arith.constant 0 : i32
    %c0_i32_0 = arith.constant 0 : i32
    %c0_i32_1 = arith.constant 0 : i32
    %c0_i32_2 = arith.constant 0 : i32
    return %c0_i32, %c0_i32_0, %c0_i32_1 : i32, i32, i32
  }
  func.func @transform_4(%arg0: i32) -> (i32, i32) {
    %c0_i32 = arith.constant 0 : i32
    %c0_i32_0 = arith.constant 0 : i32
    %c0_i32_1 = arith.constant 0 : i32
    return %c0_i32, %c0_i32_0 : i32, i32
  }
  func.func @transform_5(%arg0: i32) -> (i32, i32, i32) {
    %c0_i32 = arith.constant 0 : i32
    %c0_i32_0 = arith.constant 0 : i32
    %c0_i32_1 = arith.constant 0 : i32
    return %arg0, %c0_i32, %c0_i32_0 : i32, i32, i32
  }
}

</mosaic_0001>

<llo_original>
// kernel: tile.13
$region0: #{tile.13}
  #allocation0 [shape = 's32[1]{0}', space=sflag, size = 0x4, scoped, tag = 'scoped memory for tile.13']
  %s0 = inlined_call_operand.vmem [shape: f32[8], index: 0, kind: input, shape index: {}]
  %s1 = inlined_call_operand.vmem [shape: f32[16,8], index: 1, kind: output, shape index: {}]
  // Predicated region
  $region2: #{tile.13} parent=0 // pred_check
    _
  $region3: #{tile.13} parent=0 // pred_check_branch
    %3 = sbr.rel (0) target = $region5
  $region4: #{tile.13} parent=0 // pred_region
    _
  $region5: #{tile.13} parent=0 // pred_fallthru
    _
  %v4 = vld [vmem:[%s0] ss:$0 sm:$0xff]
  %5 = vst [vmem:[%s1] sm:$0xff] %v4
  %s6 = scalar_lea.vmem %s1, 8
  %7 = vst [vmem:[%s6] sm:$0xff] %v4

// kernel: tile.14
$region0: #{tile.14}
  %s0 = inlined_call_operand.vmem [shape: f32[16,8], index: 0, kind: input, shape index: {}]
  %s1 = inlined_call_operand.vmem [shape: f32[1,128], index: 1, kind: output, shape index: {}]
  $region1: #{tile.14} parent=0
    #allocation0 [shape = 'u8[4096]{0}', space=vmem, size = 0x1000, scoped, tag = 'scoped mem for output reshape']
    %v2 = vld [vmem:[%s0] sm:$0x1]
    %vm3 = vcmask 64512
    %4 = vst.msk [vmem:[#allocation0] sm:$0x1] %vm3, %v2
    %s5 = scalar_lea.vmem %s0, 15
    %v6 = vld [vmem:[%s5] sm:$0x1]
    %7 = vrot.lane.b32.xlu0 %v6, 120
    %v8 = vpop.permute.xlu0 %7
    %vm9 = vcmask 1048512
    %10 = vst.msk [vmem:[#allocation0] sm:$0x1] %vm9, %v8
    %s11 = scalar_lea.vmem %s0, 14
    %v12 = vld [vmem:[%s11] sm:$0x1]
    %13 = vrot.lane.b32.xlu0 %v12, 112
    %v14 = vpop.permute.xlu0 %13
    %vm15 = vcmask 982912
    %16 = vst.msk [vmem:[#allocation0] sm:$0x1] %vm15, %v14
    %s17 = scalar_lea.vmem %s0, 13
    %v18 = vld [vmem:[%s17] sm:$0x1]
    %19 = vrot.lane.b32.xlu0 %v18, 104
    %v20 = vpop.permute.xlu0 %19
    %vm21 = vcmask 917312
    %22 = vst.msk [vmem:[#allocation0] sm:$0x1] %vm21, %v20
    %s23 = scalar_lea.vmem %s0, 12
    %v24 = vld [vmem:[%s23] sm:$0x1]
    %25 = vrot.lane.b32.xlu0 %v24, 96
    %v26 = vpop.permute.xlu0 %25
    %vm27 = vcmask 851712
    %28 = vst.msk [vmem:[#allocation0] sm:$0x1] %vm27, %v26
    %s29 = scalar_lea.vmem %s0, 11
    %v30 = vld [vmem:[%s29] sm:$0x1]
    %31 = vrot.lane.b32.xlu0 %v30, 88
    %v32 = vpop.permute.xlu0 %31
    %vm33 = vcmask 786112
    %34 = vst.msk [vmem:[#allocation0] sm:$0x1] %vm33, %v32
    %s35 = scalar_lea.vmem %s0, 10
    %v36 = vld [vmem:[%s35] sm:$0x1]
    %37 = vrot.lane.b32.xlu0 %v36, 80
    %v38 = vpop.permute.xlu0 %37
    %vm39 = vcmask 720512
    %40 = vst.msk [vmem:[#allocation0] sm:$0x1] %vm39, %v38
    %s41 = scalar_lea.vmem %s0, 9
    %v42 = vld [vmem:[%s41] sm:$0x1]
    %43 = vrot.lane.b32.xlu0 %v42, 72
    %v44 = vpop.permute.xlu0 %43
    %vm45 = vcmask 654912
    %46 = vst.msk [vmem:[#allocation0] sm:$0x1] %vm45, %v44
    %s47 = scalar_lea.vmem %s0, 8
    %v48 = vld [vmem:[%s47] sm:$0x1]
    %49 = vrot.lane.b32.xlu0 %v48, 64
    %v50 = vpop.permute.xlu0 %49
    %vm51 = vcmask 589312
    %52 = vst.msk [vmem:[#allocation0] sm:$0x1] %vm51, %v50
    %s53 = scalar_lea.vmem %s0, 7
    %v54 = vld [vmem:[%s53] sm:$0x1]
    %55 = vrot.lane.b32.xlu0 %v54, 56
    %v56 = vpop.permute.xlu0 %55
    %vm57 = vcmask 523712
    %58 = vst.msk [vmem:[#allocation0] sm:$0x1] %vm57, %v56
    %s59 = scalar_lea.vmem %s0, 6
    %v60 = vld [vmem:[%s59] sm:$0x1]
    %61 = vrot.lane.b32.xlu0 %v60, 48
    %v62 = vpop.permute.xlu0 %61
    %vm63 = vcmask 458112
    %64 = vst.msk [vmem:[#allocation0] sm:$0x1] %vm63, %v62
    %s65 = scalar_lea.vmem %s0, 5
    %v66 = vld [vmem:[%s65] sm:$0x1]
    %67 = vrot.lane.b32.xlu0 %v66, 40
    %v68 = vpop.permute.xlu0 %67
    %vm69 = vcmask 392512
    %70 = vst.msk [vmem:[#allocation0] sm:$0x1] %vm69, %v68
    %s71 = scalar_lea.vmem %s0, 4
    %v72 = vld [vmem:[%s71] sm:$0x1]
    %73 = vrot.lane.b32.xlu0 %v72, 32
    %v74 = vpop.permute.xlu0 %73
    %vm75 = vcmask 326912
    %76 = vst.msk [vmem:[#allocation0] sm:$0x1] %vm75, %v74
    %s77 = scalar_lea.vmem %s0, 3
    %v78 = vld [vmem:[%s77] sm:$0x1]
    %79 = vrot.lane.b32.xlu0 %v78, 24
    %v80 = vpop.permute.xlu0 %79
    %vm81 = vcmask 261312
    %82 = vst.msk [vmem:[#allocation0] sm:$0x1] %vm81, %v80
    %s83 = scalar_lea.vmem %s0, 2
    %v84 = vld [vmem:[%s83] sm:$0x1]
    %85 = vrot.lane.b32.xlu0 %v84, 16
    %v86 = vpop.permute.xlu0 %85
    %vm87 = vcmask 195712
    %88 = vst.msk [vmem:[#allocation0] sm:$0x1] %vm87, %v86
    %s89 = scalar_lea.vmem %s0, 1
    %v90 = vld [vmem:[%s89] sm:$0x1]
    %91 = vrot.lane.b32.xlu0 %v90, 8
    %v92 = vpop.permute.xlu0 %91
    %vm93 = vcmask 130112
    %94 = vst.msk [vmem:[#allocation0] sm:$0x1] %vm93, %v92
    %s96 = sshll.u32 1, 1
    %s97 = ssub.s32 %s96, 1
    %v99 = vld [vmem:[#allocation0] sm:%s97]
    %s100 = sshll.u32 1, 1
    %s101 = ssub.s32 %s100, 1
    %102 = vst [vmem:[%s1] sm:%s101] %v99

// kernel: basic_conv_forward.1
$region0: #{basic_conv_forward.1}
  #allocation0 [shape = 'u32[]', space=smem, size = 0x4, offset = 0x4, fixed_abs, tag = 'smem constant byte address 0x4 - core index']
  #allocation1 [shape = 'u32[144,128]{1,0:T(1,128)}', space=vmem, size = 0x12000, scoped, tag = 'internal scratch']
  #allocation2 [shape = 'bf16[18,128]{1,0:T(8,128)(2,1)}', space=vmem, size = 0x1800, scoped, tag = 'scratch operand']
  %s0 = inlined_call_operand.vmem [shape: bf16[2,18,64], index: 0, kind: input, shape index: {}]
  %s1 = inlined_call_operand.vmem [shape: bf16[3,64,128], index: 1, kind: input, shape index: {}]
  %s2 = inlined_call_operand.vmem [shape: f32[1,128], index: 2, kind: input, shape index: {}]
  %s3 = inlined_call_operand.vmem [shape: bf16[3,128,128], index: 3, kind: input, shape index: {}]
  %s4 = inlined_call_operand.vmem [shape: f32[1,128], index: 4, kind: input, shape index: {}]
  %s5 = inlined_call_operand.vmem [shape: f32[2,16,128], index: 5, kind: output, shape index: {}]
  %s6 = sld [smem:[#allocation0]]
  $region53: #{basic_conv_forward.1} parent=0
    _
  %s8 = ssub.s32 1, %s6
  %s9 = scalar_select 0, %s8, %s6
  loop: start=0, step=1, limit=4
  $region2: #{basic_conv_forward.1} parent=0 // loop_pre_header
    _
  $region3: #{basic_conv_forward.1} parent=0 // loop_header
    %s11 = sphi 0, %s15
    %p12 = scmp.ge.s32.totalorder %s11, 4
    %s21 = sphi 0, %s23
    %s24 = sphi 0, %s21
    %s25 = sphi 0, %s24
    %s41 = sphi 0, %s25
    %s45 = sphi 0, %s45
    %s47 = sphi 0, %s45
    %s48 = sphi 0, %s47
    %s62 = sphi 0, %s48
    %s66 = sphi 0, %s66
    %s68 = sphi 0, %s66
    %s69 = sphi 0, %s68
    %s83 = sphi 0, %s69
    %s87 = sphi 0, %s87
    %s89 = sphi 0, %s87
    %s90 = sphi 0, %s89
    %s104 = sphi 0, %s90
    %s108 = sphi 0, %s108
    %s110 = sphi 0, %s108
    %s111 = sphi 0, %s110
    %s125 = sphi 0, %s111
    %s131 = sphi 0, %s133
    %s134 = sphi 0, %s131
    %s135 = sphi 0, %s134
    %s151 = sphi 0, %s135
  $region4: #{basic_conv_forward.1} parent=0 // loop_header_branch
    %14 = sbr.rel (%p12) target = $region8
  $region5: #{basic_conv_forward.1} parent=0 // loop_body
    %s16 = ssub.s32 %s11, 1
    %s17 = ssub.s32 %s11, 2
    %s18 = sadd.s32 %s11, 1
    %s19 = ssub.s32 %s11, %s18
    %p20 = scmp.eq.s32.totalorder %s19, 0
    %s22 = sadd.s32 %s21, 1
    %s23 = scalar_select %p20, %s21, %s22
    %p26 = pneg %p20
    %p27 = scmp.eq.s32.totalorder %s11, 1
    %p28 = por %p26, %p27
    %p29 = scmp.ne.s32.totalorder %s21, %s24
    %p30 = scmp.eq.s32.totalorder %s11, 0
    %p31 = por %p29, %p30
    %p32 = scmp.ne.s32.totalorder %s21, %s24
    %p33 = scmp.eq.s32.totalorder %s16, 1
    %p34 = por %p32, %p33
    %p35 = scmp.ne.s32.totalorder %s24, %s25
    %p36 = scmp.eq.s32.totalorder %s16, 0
    %p37 = por %p35, %p36
    %p38 = scmp.ne.s32.totalorder %s24, %s25
    %p39 = scmp.eq.s32.totalorder %s17, 1
    %p40 = por %p38, %p39
    %p42 = scmp.ne.s32.totalorder %s25, %s41
    %p43 = scmp.eq.s32.totalorder %s17, 0
    %p44 = por %p42, %p43
    %s46 = sadd.s32 %s45, 1
    %p49 = scmp.eq.s32.totalorder %s11, 1
    %p50 = scmp.ne.s32.totalorder %s45, %s47
    %p51 = scmp.eq.s32.totalorder %s11, 0
    %p52 = por %p50, %p51
    %p53 = scmp.ne.s32.totalorder %s45, %s47
    %p54 = scmp.eq.s32.totalorder %s16, 1
    %p55 = por %p53, %p54
    %p56 = scmp.ne.s32.totalorder %s47, %s48
    %p57 = scmp.eq.s32.totalorder %s16, 0
    %p58 = por %p56, %p57
    %p59 = scmp.ne.s32.totalorder %s47, %s48
    %p60 = scmp.eq.s32.totalorder %s17, 1
    %p61 = por %p59, %p60
    %p63 = scmp.ne.s32.totalorder %s48, %s62
    %p64 = scmp.eq.s32.totalorder %s17, 0
    %p65 = por %p63, %p64
    %s67 = sadd.s32 %s66, 1
    %p70 = scmp.eq.s32.totalorder %s11, 1
    %p71 = scmp.ne.s32.totalorder %s66, %s68
    %p72 = scmp.eq.s32.totalorder %s11, 0
    %p73 = por %p71, %p72
    %p74 = scmp.ne.s32.totalorder %s66, %s68
    %p75 = scmp.eq.s32.totalorder %s16, 1
    %p76 = por %p74, %p75
    %p77 = scmp.ne.s32.totalorder %s68, %s69
    %p78 = scmp.eq.s32.totalorder %s16, 0
    %p79 = por %p77, %p78
    %p80 = scmp.ne.s32.totalorder %s68, %s69
    %p81 = scmp.eq.s32.totalorder %s17, 1
    %p82 = por %p80, %p81
    %p84 = scmp.ne.s32.totalorder %s69, %s83
    %p85 = scmp.eq.s32.totalorder %s17, 0
    %p86 = por %p84, %p85
    %s88 = sadd.s32 %s87, 1
    %p91 = scmp.eq.s32.totalorder %s11, 1
    %p92 = scmp.ne.s32.totalorder %s87, %s89
    %p93 = scmp.eq.s32.totalorder %s11, 0
    %p94 = por %p92, %p93
    %p95 = scmp.ne.s32.totalorder %s87, %s89
    %p96 = scmp.eq.s32.totalorder %s16, 1
    %p97 = por %p95, %p96
    %p98 = scmp.ne.s32.totalorder %s89, %s90
    %p99 = scmp.eq.s32.totalorder %s16, 0
    %p100 = por %p98, %p99
    %p101 = scmp.ne.s32.totalorder %s89, %s90
    %p102 = scmp.eq.s32.totalorder %s17, 1
    %p103 = por %p101, %p102
    %p105 = scmp.ne.s32.totalorder %s90, %s104
    %p106 = scmp.eq.s32.totalorder %s17, 0
    %p107 = por %p105, %p106
    %s109 = sadd.s32 %s108, 1
    %p112 = scmp.eq.s32.totalorder %s11, 1
    %p113 = scmp.ne.s32.totalorder %s108, %s110
    %p114 = scmp.eq.s32.totalorder %s11, 0
    %p115 = por %p113, %p114
    %p116 = scmp.ne.s32.totalorder %s108, %s110
    %p117 = scmp.eq.s32.totalorder %s16, 1
    %p118 = por %p116, %p117
    %p119 = scmp.ne.s32.totalorder %s110, %s111
    %p120 = scmp.eq.s32.totalorder %s16, 0
    %p121 = por %p119, %p120
    %p122 = scmp.ne.s32.totalorder %s110, %s111
    %p123 = scmp.eq.s32.totalorder %s17, 1
    %p124 = por %p122, %p123
    %p126 = scmp.ne.s32.totalorder %s111, %s125
    %p127 = scmp.eq.s32.totalorder %s17, 0
    %p128 = por %p126, %p127
    %s129 = ssub.s32 %s11, %s18
    %p130 = scmp.eq.s32.totalorder %s129, 0
    %s132 = sadd.s32 %s131, 1
    %s133 = scalar_select %p130, %s131, %s132
    %p136 = pneg %p130
    %p137 = scmp.eq.s32.totalorder %s11, 1
    %p138 = por %p136, %p137
    %p139 = scmp.ne.s32.totalorder %s131, %s134
    %p140 = scmp.eq.s32.totalorder %s11, 0
    %p141 = por %p139, %p140
    %p142 = scmp.ne.s32.totalorder %s131, %s134
    %p143 = scmp.eq.s32.totalorder %s16, 1
    %p144 = por %p142, %p143
    %p145 = scmp.ne.s32.totalorder %s134, %s135
    %p146 = scmp.eq.s32.totalorder %s16, 0
    %p147 = por %p145, %p146
    %p148 = scmp.ne.s32.totalorder %s134, %s135
    %p149 = scmp.eq.s32.totalorder %s17, 1
    %p150 = por %p148, %p149
    %p152 = scmp.ne.s32.totalorder %s135, %s151
    %p153 = scmp.eq.s32.totalorder %s17, 0
    %p154 = por %p152, %p153
    %p155 = scmp.le.s32.totalorder 1, %s11
    %p156 = scmp.lt.s32.totalorder %s11, 3
    %p157 = pnand %p155, %p156
    %p158 = pneg %p157
    // Predicated region
    $region9: #{basic_conv_forward.1} parent=5 // pred_check
      _
    $region10: #{basic_conv_forward.1} parent=5 // pred_check_branch
      %160 = sbr.rel (%p157) target = $region12
    $region11: #{basic_conv_forward.1} parent=5 // pred_region
      %s161 = ssub.s32 %s11, 1
      // Predicated region
      $region13: #{basic_conv_forward.1} parent=11 // pred_check
        %p162 = pneg %p58
      $region14: #{basic_conv_forward.1} parent=11 // pred_check_branch
        %164 = sbr.rel (%p162) target = $region16
      $region15: #{basic_conv_forward.1} parent=11 // pred_region
        _
      $region16: #{basic_conv_forward.1} parent=11 // pred_fallthru
        _
      // Predicated region
      $region17: #{basic_conv_forward.1} parent=11 // pred_check
        %p165 = pneg %p79
      $region18: #{basic_conv_forward.1} parent=11 // pred_check_branch
        %167 = sbr.rel (%p165) target = $region20
      $region19: #{basic_conv_forward.1} parent=11 // pred_region
        _
      $region20: #{basic_conv_forward.1} parent=11 // pred_fallthru
        _
      // Predicated region
      $region21: #{basic_conv_forward.1} parent=11 // pred_check
        %p168 = pneg %p100
      $region22: #{basic_conv_forward.1} parent=11 // pred_check_branch
        %170 = sbr.rel (%p168) target = $region24
      $region23: #{basic_conv_forward.1} parent=11 // pred_region
        _
      $region24: #{basic_conv_forward.1} parent=11 // pred_fallthru
        _
      // Predicated region
      $region25: #{basic_conv_forward.1} parent=11 // pred_check
        %p171 = pneg %p121
      $region26: #{basic_conv_forward.1} parent=11 // pred_check_branch
        %173 = sbr.rel (%p171) target = $region28
      $region27: #{basic_conv_forward.1} parent=11 // pred_region
        _
      $region28: #{basic_conv_forward.1} parent=11 // pred_fallthru
        _
    $region12: #{basic_conv_forward.1} parent=5 // pred_fallthru
      _
    %p174 = scmp.lt.s32.totalorder %s11, 2
    // Predicated region
    $region29: #{basic_conv_forward.1} parent=5 // pred_check
      %p175 = pneg %p174
    $region30: #{basic_conv_forward.1} parent=5 // pred_check_branch
      %177 = sbr.rel (%p175) target = $region32
    $region31: #{basic_conv_forward.1} parent=5 // pred_region
      // Predicated region
      $region33: #{basic_conv_forward.1} parent=31 // pred_check
        %p178 = pneg %p31
      $region34: #{basic_conv_forward.1} parent=31 // pred_check_branch
        %180 = sbr.rel (%p178) target = $region36
      $region35: #{basic_conv_forward.1} parent=31 // pred_region
        %p181 = scmp.lt.s32.totalorder %s11, 1
        %s182 = scalar_select %p181, %s11, 1
        %s183 = smul.addr %s182, 3
        %s184 = smul.addr %s183, 4
        %s185 = scalar_lea.vmem %s0, %s184
      $region36: #{basic_conv_forward.1} parent=31 // pred_fallthru
        _
    $region32: #{basic_conv_forward.1} parent=5 // pred_fallthru
      _
    %p186 = scmp.le.s32.totalorder 1, %s11
    %p187 = scmp.lt.s32.totalorder %s11, 3
    %p188 = pnand %p186, %p187
    %p189 = pneg %p188
    // Predicated region
    $region37: #{basic_conv_forward.1} parent=5 // pred_check
      _
    $region38: #{basic_conv_forward.1} parent=5 // pred_check_branch
      %191 = sbr.rel (%p188) target = $region40
    $region39: #{basic_conv_forward.1} parent=5 // pred_region
      %s192 = ssub.s32 %s11, 1
      %p193 = scmp.lt.s32.totalorder %s16, 1
      %s194 = scalar_select %p193, %s16, 1
      %s195 = smul.addr %s194, 3
      %s196 = smul.addr %s195, 4
      %s197 = scalar_lea.vmem %s0, %s196
      %p198 = pneg %p37
      %p199 = pneg %p34
      %p200 = pneg %p58
      %p201 = pneg %p55
      %p202 = pneg %p79
      %p203 = pneg %p76
      %p204 = pneg %p100
      %p205 = pneg %p97
      %p206 = pneg %p121
      %p207 = pneg %p118
      %p208 = pneg %p147
      %p209 = pneg %p144
      %p210 = scmp.lt.s32.totalorder %s16, 1
      %s211 = scalar_select %p210, %s16, 1
      %s212 = smul.addr %s211, 2
      %s213 = smul.addr %s212, 8
      %s214 = scalar_lea.vmem %s5, %s213
      %p215 = scmp.lt.s32.totalorder %s16, 1
      %s216 = scalar_select %p215, %s16, 1
      %s217 = smul.addr %s216, 3
      %s218 = smul.addr %s217, 4
      %s219 = scalar_lea.vmem %s0, %s218
      %p220 = scmp.lt.s32.totalorder %s16, 1
      %s221 = scalar_select %p220, %s16, 1
      %s222 = smul.addr %s221, 2
      %s223 = smul.addr %s222, 8
      %s224 = scalar_lea.vmem %s5, %s223
      %v226 = vld [vmem:[%s219] sm:$0xf]
      %v227 = vld [vmem:[%s219 + $0x4] sm:$0xf]
      %v228 = vld [vmem:[%s1] sm:$0xf]
      %v229 = vld [vmem:[%s1 + $0x4] sm:$0xf]
      %v230 = vld [vmem:[%s1 + $0x8] sm:$0xf]
      %v231 = vld [vmem:[%s1 + $0xc] sm:$0xf]
      %v232 = vld [vmem:[%s1 + $0x10] sm:$0xf]
      %v233 = vld [vmem:[%s1 + $0x14] sm:$0xf]
      %v234 = vld [vmem:[%s1 + $0x18] sm:$0xf]
      %v235 = vld [vmem:[%s1 + $0x1c] sm:$0xf]
      %v236 = vld [vmem:[%s219 + $0x8] sm:$0x1]
      %s237 = scalar_lea.vmem %s1, 32
      %v238 = vld [vmem:[%s237] sm:$0xf]
      %v239 = vld [vmem:[%s237 + $0x4] sm:$0xf]
      %v240 = vld [vmem:[%s237 + $0x8] sm:$0xf]
      %v241 = vld [vmem:[%s237 + $0xc] sm:$0xf]
      %v242 = vld [vmem:[%s237 + $0x10] sm:$0xf]
      %v243 = vld [vmem:[%s237 + $0x14] sm:$0xf]
      %v244 = vld [vmem:[%s237 + $0x18] sm:$0xf]
      %v245 = vld [vmem:[%s237 + $0x1c] sm:$0xf]
      %v249 = vunpack.c.l.b16 %v226
      %v250 = vunpack.c.l.b16 %v227
      %v251 = vunpack.c.l.b16 %v236
      %v252 = vpack.c.b16 %v250, %v249
      %v253 = vpack.c.b16 %v251, %v251
      %vm254 = vsmask.f32 7424
      %v256 = vshrl.u32 %v252, 16
      %v258 = vshll.u32 %v252, 16
      %v260 = vrot.slane %v258, 1
      %v261 = vor.u32 %v256, %v260
      %v263 = vshll.u32 %v253, 16
      %v265 = vrot.slane %v263, 1
      %v266 = vsel %vm254, %v261, %v265
      %v275 = vunpack.c.l.b16 %v238
      %v276 = vunpack.c.l.b16 %v239
      %v277 = vunpack.c.l.b16 %v240
      %v278 = vunpack.c.l.b16 %v241
      %v279 = vunpack.c.l.b16 %v242
      %v280 = vunpack.c.l.b16 %v243
      %v281 = vunpack.c.l.b16 %v244
      %v282 = vunpack.c.l.b16 %v245
      %v283 = vpack.c.b16 %v276, %v275
      %v284 = vpack.c.b16 %v278, %v277
      %v285 = vpack.c.b16 %v280, %v279
      %v286 = vpack.c.b16 %v282, %v281
      %vm291 = vcmask 523264
      %v293 = vsel %vm291, %v266, 0
      %295 = vmatprep.subr.bf16.mxu0 0
      %296 = vmatpush1.bf16.msra.mxu0 0
      %297 = vmatprep.subr.bf16.mxu0 0
      %298 = vmatpush1.bf16.msra.mxu0 0
      %299 = vmatprep.subr.bf16.mxu0 0
      %300 = vmatpush1.bf16.msra.mxu0 0
      %301 = vmatprep.subr.bf16.mxu0 0
      %302 = vmatpush1.bf16.msra.mxu0 0
      %303 = vmatprep.subr.bf16.mxu0 0
      %304 = vmatpush1.bf16.msra.mxu0 %v286
      %305 = vmatprep.subr.bf16.mxu0 0
      %306 = vmatpush1.bf16.msra.mxu0 %v285
      %307 = vmatprep.subr.bf16.mxu0 0
      %308 = vmatpush1.bf16.msra.mxu0 %v284
      %309 = vmatprep.subr.bf16.mxu0 0
      %310 = vmatpush1.bf16.msra.mxu0 %v283
      %311 = vmatprep.subr.bf16.mxu0 0
      %312 = vmatpush2.bf16.msra.mxu0 0
      %313 = vmatprep.subr.bf16.mxu0 0
      %314 = vmatpush2.bf16.msra.mxu0 0
      %315 = vmatprep.subr.bf16.mxu0 0
      %316 = vmatpush2.bf16.msra.mxu0 0
      %317 = vmatprep.subr.bf16.mxu0 0
      %318 = vmatpush2.bf16.msra.mxu0 0
      %319 = vmatprep.subr.bf16.mxu0 0
      %320 = vmatpush2.bf16.msra.mxu0 0
      %321 = vmatprep.subr.bf16.mxu0 0
      %322 = vmatpush2.bf16.msra.mxu0 0
      %323 = vmatprep.subr.bf16.mxu0 0
      %324 = vmatpush2.bf16.msra.mxu0 0
      %325 = vmatprep.subr.bf16.mxu0 0
      %326 = vmatpush2.bf16.msra.mxu0 0
      %327 = vmatprep.mubr.bf16.mxu0 0
      %328 = vmatmul.mubr.bf16.gmra.mxu0 %v293
      %v329 = vpop.f32.mrf.mxu0
      %v330 = vadd.f32 0.0, %v329
      %v331 = vpop.f32.mrf.mxu0
      %v332 = vpop.f32.mrf.mxu0
      %v333 = vadd.f32 0.0, %v332
      %v334 = vpop.f32.mrf.mxu0
      %335 = vdwg.mxu0
      %v344 = vunpack.c.l.b16 %v228
      %v345 = vunpack.c.l.b16 %v229
      %v346 = vunpack.c.l.b16 %v230
      %v347 = vunpack.c.l.b16 %v231
      %v348 = vunpack.c.l.b16 %v232
      %v349 = vunpack.c.l.b16 %v233
      %v350 = vunpack.c.l.b16 %v234
      %v351 = vunpack.c.l.b16 %v235
      %v352 = vpack.c.b16 %v345, %v344
      %v353 = vpack.c.b16 %v347, %v346
      %v354 = vpack.c.b16 %v349, %v348
      %v355 = vpack.c.b16 %v351, %v350
      %v360 = vsel %vm291, %v252, 0
      %362 = vmatprep.subr.bf16.mxu0 0
      %363 = vmatpush1.bf16.msra.mxu0 0
      %364 = vmatprep.subr.bf16.mxu0 0
      %365 = vmatpush1.bf16.msra.mxu0 0
      %366 = vmatprep.subr.bf16.mxu0 0
      %367 = vmatpush1.bf16.msra.mxu0 0
      %368 = vmatprep.subr.bf16.mxu0 0
      %369 = vmatpush1.bf16.msra.mxu0 0
      %370 = vmatprep.subr.bf16.mxu0 0
      %371 = vmatpush1.bf16.msra.mxu0 %v355
      %372 = vmatprep.subr.bf16.mxu0 0
      %373 = vmatpush1.bf16.msra.mxu0 %v354
      %374 = vmatprep.subr.bf16.mxu0 0
      %375 = vmatpush1.bf16.msra.mxu0 %v353
      %376 = vmatprep.subr.bf16.mxu0 0
      %377 = vmatpush1.bf16.msra.mxu0 %v352
      %378 = vmatprep.subr.bf16.mxu0 0
      %379 = vmatpush2.bf16.msra.mxu0 0
      %380 = vmatprep.subr.bf16.mxu0 0
      %381 = vmatpush2.bf16.msra.mxu0 0
      %382 = vmatprep.subr.bf16.mxu0 0
      %383 = vmatpush2.bf16.msra.mxu0 0
      %384 = vmatprep.subr.bf16.mxu0 0
      %385 = vmatpush2.bf16.msra.mxu0 0
      %386 = vmatprep.subr.bf16.mxu0 0
      %387 = vmatpush2.bf16.msra.mxu0 0
      %388 = vmatprep.subr.bf16.mxu0 0
      %389 = vmatpush2.bf16.msra.mxu0 0
      %390 = vmatprep.subr.bf16.mxu0 0
      %391 = vmatpush2.bf16.msra.mxu0 0
      %392 = vmatprep.subr.bf16.mxu0 0
      %393 = vmatpush2.bf16.msra.mxu0 0
      %394 = vmatprep.mubr.bf16.mxu0 0
      %395 = vmatmul.mubr.bf16.gmra.mxu0 %v360
      %v396 = vpop.f32.mrf.mxu0
      %v397 = vadd.f32 %v330, %v396
      %v398 = vpop.f32.mrf.mxu0
      %v399 = vpop.f32.mrf.mxu0
      %v400 = vadd.f32 %v333, %v399
      %v401 = vpop.f32.mrf.mxu0
      %402 = vdwg.mxu0
      %v403 = vld [vmem:[%s219] sm:$0xe]
      %s404 = scalar_lea.vmem %s1, 64
      %v405 = vld [vmem:[%s404] sm:$0xf]
      %v406 = vld [vmem:[%s404 + $0x4] sm:$0xf]
      %v407 = vld [vmem:[%s404 + $0x8] sm:$0xf]
      %v408 = vld [vmem:[%s404 + $0xc] sm:$0xf]
      %v409 = vld [vmem:[%s404 + $0x10] sm:$0xf]
      %v410 = vld [vmem:[%s404 + $0x14] sm:$0xf]
      %v411 = vld [vmem:[%s404 + $0x18] sm:$0xf]
      %v412 = vld [vmem:[%s404 + $0x1c] sm:$0xf]
      %v414 = vunpack.c.l.b16 %v403
      %v415 = vpack.c.b16 %v250, %v414
      %vm416 = vcmask 1046528
      %v417 = vrot.slane %v415, 1
      %v418 = vrot.slane %v253, 1
      %v419 = vsel %vm416, %v417, %v418
      %v428 = vunpack.c.l.b16 %v405
      %v429 = vunpack.c.l.b16 %v406
      %v430 = vunpack.c.l.b16 %v407
      %v431 = vunpack.c.l.b16 %v408
      %v432 = vunpack.c.l.b16 %v409
      %v433 = vunpack.c.l.b16 %v410
      %v434 = vunpack.c.l.b16 %v411
      %v435 = vunpack.c.l.b16 %v412
      %v436 = vpack.c.b16 %v429, %v428
      %v437 = vpack.c.b16 %v431, %v430
      %v438 = vpack.c.b16 %v433, %v432
      %v439 = vpack.c.b16 %v435, %v434
      %v445 = vsel %vm291, %v419, 0
      %447 = vmatprep.subr.bf16.mxu0 0
      %448 = vmatpush1.bf16.msra.mxu0 0
      %449 = vmatprep.subr.bf16.mxu0 0
      %450 = vmatpush1.bf16.msra.mxu0 0
      %451 = vmatprep.subr.bf16.mxu0 0
      %452 = vmatpush1.bf16.msra.mxu0 0
      %453 = vmatprep.subr.bf16.mxu0 0
      %454 = vmatpush1.bf16.msra.mxu0 0
      %455 = vmatprep.subr.bf16.mxu0 0
      %456 = vmatpush1.bf16.msra.mxu0 %v439
      %457 = vmatprep.subr.bf16.mxu0 0
      %458 = vmatpush1.bf16.msra.mxu0 %v438
      %459 = vmatprep.subr.bf16.mxu0 0
      %460 = vmatpush1.bf16.msra.mxu0 %v437
      %461 = vmatprep.subr.bf16.mxu0 0
      %462 = vmatpush1.bf16.msra.mxu0 %v436
      %463 = vmatprep.subr.bf16.mxu0 0
      %464 = vmatpush2.bf16.msra.mxu0 0
      %465 = vmatprep.subr.bf16.mxu0 0
      %466 = vmatpush2.bf16.msra.mxu0 0
      %467 = vmatprep.subr.bf16.mxu0 0
      %468 = vmatpush2.bf16.msra.mxu0 0
      %469 = vmatprep.subr.bf16.mxu0 0
      %470 = vmatpush2.bf16.msra.mxu0 0
      %471 = vmatprep.subr.bf16.mxu0 0
      %472 = vmatpush2.bf16.msra.mxu0 0
      %473 = vmatprep.subr.bf16.mxu0 0
      %474 = vmatpush2.bf16.msra.mxu0 0
      %475 = vmatprep.subr.bf16.mxu0 0
      %476 = vmatpush2.bf16.msra.mxu0 0
      %477 = vmatprep.subr.bf16.mxu0 0
      %478 = vmatpush2.bf16.msra.mxu0 0
      %479 = vmatprep.mubr.bf16.mxu0 0
      %480 = vmatmul.mubr.bf16.gmra.mxu0 %v445
      %v481 = vpop.f32.mrf.mxu0
      %v482 = vadd.f32 0.0, %v481
      %v483 = vpop.f32.mrf.mxu0
      %v484 = vpop.f32.mrf.mxu0
      %v485 = vadd.f32 0.0, %v484
      %v486 = vpop.f32.mrf.mxu0
      %487 = vdwg.mxu0
      %v488 = vadd.f32 %v397, %v482
      %v489 = vadd.f32 %v400, %v485
      %v490 = vld [vmem:[%s2] sm:$0x1]
      %v492 = vlaneseq
      %v493 = vshrl.u32 %v492, 7
      %v494 = vsub.s32 0, %v493
      %v495 = vrot.slane %v490, %v494
      %v497 = vadd.f32 %v488, %v495
      %v498 = vadd.f32 %v489, %v495
      %v499 = vmax.f32 %v497, 0.0
      %v500 = vmax.f32 %v498, 0.0
      %501 = vst [vmem:[#allocation2] sm:$0xf] 0
      %502 = vst [vmem:[#allocation2 + $0x4] sm:$0xf] 0
      %503 = vst [vmem:[#allocation2 + $0x8] sm:$0x1] 0
      %v504 = vpack.c.bf16 %v500, %v499
      %v506 = vunpack.c.l.b16 %v504
      %v507 = vunpack.c.h.b16 %v504
      %v508 = vpack.c.b16 %v506, %v506
      %v509 = vpack.c.b16 %v507, %v507
      %vm510 = vsmask.f32 256
      %vm511 = vsmask.f32 4368
      %vm512 = vmor %vm510, %vm511
      %v514 = vshrl.u32 %v508, 16
      %v516 = vrot.slane %v514, 7
      %v517 = vshll.u32 %v508, 16
      %v519 = vor.u32 %v516, %v517
      %v520 = vrot.slane %v516, 4
      %v522 = vshrl.u32 %v509, 16
      %v524 = vrot.slane %v522, 7
      %v525 = vshll.u32 %v509, 16
      %v527 = vor.u32 %v524, %v525
      %v528 = vsel %vm512, %v520, %v527
      %v529 = vrot.slane %v524, 4
      %vm533 = vcmask 1043456
      %vm534 = vsmask.f32 7938
      %vm535 = vmand %vm533, %vm534
      %v536 = vld [vmem:[#allocation2] sm:$0xf]
      %v537 = vsel %vm535, %v519, %v536
      %538 = vst [vmem:[#allocation2] sm:$0xf] %v537
      %539 = vst [vmem:[#allocation2 + $0x4] sm:$0xf] %v528
      %vm540 = vcmask 1040384
      %vm541 = vmand %vm540, %vm510
      %v542 = vld [vmem:[#allocation2 + $0x8] sm:$0x1]
      %v543 = vsel %vm541, %v529, %v542
      %544 = vst [vmem:[#allocation2 + $0x8] sm:$0x1] %v543
      %v545 = vld [vmem:[#allocation2] sm:$0xf]
      %v546 = vld [vmem:[#allocation2 + $0x4] sm:$0xf]
      %v547 = vld [vmem:[%s3] sm:$0xf]
      %v548 = vld [vmem:[%s3 + $0x4] sm:$0xf]
      %v549 = vld [vmem:[%s3 + $0x8] sm:$0xf]
      %v550 = vld [vmem:[%s3 + $0xc] sm:$0xf]
      %v551 = vld [vmem:[%s3 + $0x10] sm:$0xf]
      %v552 = vld [vmem:[%s3 + $0x14] sm:$0xf]
      %v553 = vld [vmem:[%s3 + $0x18] sm:$0xf]
      %v554 = vld [vmem:[%s3 + $0x1c] sm:$0xf]
      %v555 = vld [vmem:[%s3 + $0x20] sm:$0xf]
      %v556 = vld [vmem:[%s3 + $0x24] sm:$0xf]
      %v557 = vld [vmem:[%s3 + $0x28] sm:$0xf]
      %v558 = vld [vmem:[%s3 + $0x2c] sm:$0xf]
      %v559 = vld [vmem:[%s3 + $0x30] sm:$0xf]
      %v560 = vld [vmem:[%s3 + $0x34] sm:$0xf]
      %v561 = vld [vmem:[%s3 + $0x38] sm:$0xf]
      %v562 = vld [vmem:[%s3 + $0x3c] sm:$0xf]
      %v563 = vld [vmem:[#allocation2 + $0x8] sm:$0x1]
      %s564 = scalar_lea.vmem %s3, 64
      %v565 = vld [vmem:[%s564] sm:$0xf]
      %v566 = vld [vmem:[%s564 + $0x4] sm:$0xf]
      %v567 = vld [vmem:[%s564 + $0x8] sm:$0xf]
      %v568 = vld [vmem:[%s564 + $0xc] sm:$0xf]
      %v569 = vld [vmem:[%s564 + $0x10] sm:$0xf]
      %v570 = vld [vmem:[%s564 + $0x14] sm:$0xf]
      %v571 = vld [vmem:[%s564 + $0x18] sm:$0xf]
      %v572 = vld [vmem:[%s564 + $0x1c] sm:$0xf]
      %v573 = vld [vmem:[%s564 + $0x20] sm:$0xf]
      %v574 = vld [vmem:[%s564 + $0x24] sm:$0xf]
      %v575 = vld [vmem:[%s564 + $0x28] sm:$0xf]
      %v576 = vld [vmem:[%s564 + $0x2c] sm:$0xf]
      %v577 = vld [vmem:[%s564 + $0x30] sm:$0xf]
      %v578 = vld [vmem:[%s564 + $0x34] sm:$0xf]
      %v579 = vld [vmem:[%s564 + $0x38] sm:$0xf]
      %v580 = vld [vmem:[%s564 + $0x3c] sm:$0xf]
      %v584 = vunpack.c.l.b16 %v545
      %v585 = vunpack.c.l.b16 %v546
      %v586 = vunpack.c.l.b16 %v563
      %v587 = vpack.c.b16 %v585, %v584
      %v588 = vpack.c.b16 %v586, %v586
      %v590 = vshrl.u32 %v587, 16
      %v592 = vshll.u32 %v587, 16
      %v594 = vrot.slane %v592, 1
      %v595 = vor.u32 %v590, %v594
      %v597 = vshll.u32 %v588, 16
      %v599 = vrot.slane %v597, 1
      %v600 = vsel %vm254, %v595, %v599
      %v618 = vunpack.c.l.b16 %v565
      %v619 = vunpack.c.l.b16 %v566
      %v620 = vunpack.c.l.b16 %v567
      %v621 = vunpack.c.l.b16 %v568
      %v622 = vunpack.c.l.b16 %v569
      %v623 = vunpack.c.l.b16 %v570
      %v624 = vunpack.c.l.b16 %v571
      %v625 = vunpack.c.l.b16 %v572
      %v626 = vunpack.c.l.b16 %v573
      %v627 = vunpack.c.l.b16 %v574
      %v628 = vunpack.c.l.b16 %v575
      %v629 = vunpack.c.l.b16 %v576
      %v630 = vunpack.c.l.b16 %v577
      %v631 = vunpack.c.l.b16 %v578
      %v632 = vunpack.c.l.b16 %v579
      %v633 = vunpack.c.l.b16 %v580
      %v634 = vpack.c.b16 %v619, %v618
      %v635 = vpack.c.b16 %v621, %v620
      %v636 = vpack.c.b16 %v623, %v622
      %v637 = vpack.c.b16 %v625, %v624
      %v638 = vpack.c.b16 %v627, %v626
      %v639 = vpack.c.b16 %v629, %v628
      %v640 = vpack.c.b16 %v631, %v630
      %v641 = vpack.c.b16 %v633, %v632
      %650 = vmatprep.subr.bf16.mxu0 0
      %651 = vmatpush1.bf16.msra.mxu0 %v641
      %652 = vmatprep.subr.bf16.mxu0 0
      %653 = vmatpush1.bf16.msra.mxu0 %v640
      %654 = vmatprep.subr.bf16.mxu0 0
      %655 = vmatpush1.bf16.msra.mxu0 %v639
      %656 = vmatprep.subr.bf16.mxu0 0
      %657 = vmatpush1.bf16.msra.mxu0 %v638
      %658 = vmatprep.subr.bf16.mxu0 0
      %659 = vmatpush1.bf16.msra.mxu0 %v637
      %660 = vmatprep.subr.bf16.mxu0 0
      %661 = vmatpush1.bf16.msra.mxu0 %v636
      %662 = vmatprep.subr.bf16.mxu0 0
      %663 = vmatpush1.bf16.msra.mxu0 %v635
      %664 = vmatprep.subr.bf16.mxu0 0
      %665 = vmatpush1.bf16.msra.mxu0 %v634
      %666 = vmatprep.subr.bf16.mxu0 0
      %667 = vmatpush2.bf16.msra.mxu0 0
      %668 = vmatprep.subr.bf16.mxu0 0
      %669 = vmatpush2.bf16.msra.mxu0 0
      %670 = vmatprep.subr.bf16.mxu0 0
      %671 = vmatpush2.bf16.msra.mxu0 0
      %672 = vmatprep.subr.bf16.mxu0 0
      %673 = vmatpush2.bf16.msra.mxu0 0
      %674 = vmatprep.subr.bf16.mxu0 0
      %675 = vmatpush2.bf16.msra.mxu0 0
      %676 = vmatprep.subr.bf16.mxu0 0
      %677 = vmatpush2.bf16.msra.mxu0 0
      %678 = vmatprep.subr.bf16.mxu0 0
      %679 = vmatpush2.bf16.msra.mxu0 0
      %680 = vmatprep.subr.bf16.mxu0 0
      %681 = vmatpush2.bf16.msra.mxu0 0
      %682 = vmatprep.mubr.bf16.mxu0 0
      %683 = vmatmul.mubr.bf16.gmra.mxu0 %v600
      %v684 = vpop.f32.mrf.mxu0
      %v685 = vadd.f32 0.0, %v684
      %v686 = vpop.f32.mrf.mxu0
      %v687 = vpop.f32.mrf.mxu0
      %v688 = vadd.f32 0.0, %v687
      %v689 = vpop.f32.mrf.mxu0
      %690 = vdwg.mxu0
      %v708 = vunpack.c.l.b16 %v547
      %v709 = vunpack.c.l.b16 %v548
      %v710 = vunpack.c.l.b16 %v549
      %v711 = vunpack.c.l.b16 %v550
      %v712 = vunpack.c.l.b16 %v551
      %v713 = vunpack.c.l.b16 %v552
      %v714 = vunpack.c.l.b16 %v553
      %v715 = vunpack.c.l.b16 %v554
      %v716 = vunpack.c.l.b16 %v555
      %v717 = vunpack.c.l.b16 %v556
      %v718 = vunpack.c.l.b16 %v557
      %v719 = vunpack.c.l.b16 %v558
      %v720 = vunpack.c.l.b16 %v559
      %v721 = vunpack.c.l.b16 %v560
      %v722 = vunpack.c.l.b16 %v561
      %v723 = vunpack.c.l.b16 %v562
      %v724 = vpack.c.b16 %v709, %v708
      %v725 = vpack.c.b16 %v711, %v710
      %v726 = vpack.c.b16 %v713, %v712
      %v727 = vpack.c.b16 %v715, %v714
      %v728 = vpack.c.b16 %v717, %v716
      %v729 = vpack.c.b16 %v719, %v718
      %v730 = vpack.c.b16 %v721, %v720
      %v731 = vpack.c.b16 %v723, %v722
      %740 = vmatprep.subr.bf16.mxu0 0
      %741 = vmatpush1.bf16.msra.mxu0 %v731
      %742 = vmatprep.subr.bf16.mxu0 0
      %743 = vmatpush1.bf16.msra.mxu0 %v730
      %744 = vmatprep.subr.bf16.mxu0 0
      %745 = vmatpush1.bf16.msra.mxu0 %v729
      %746 = vmatprep.subr.bf16.mxu0 0
      %747 = vmatpush1.bf16.msra.mxu0 %v728
      %748 = vmatprep.subr.bf16.mxu0 0
      %749 = vmatpush1.bf16.msra.mxu0 %v727
      %750 = vmatprep.subr.bf16.mxu0 0
      %751 = vmatpush1.bf16.msra.mxu0 %v726
      %752 = vmatprep.subr.bf16.mxu0 0
      %753 = vmatpush1.bf16.msra.mxu0 %v725
      %754 = vmatprep.subr.bf16.mxu0 0
      %755 = vmatpush1.bf16.msra.mxu0 %v724
      %756 = vmatprep.subr.bf16.mxu0 0
      %757 = vmatpush2.bf16.msra.mxu0 0
      %758 = vmatprep.subr.bf16.mxu0 0
      %759 = vmatpush2.bf16.msra.mxu0 0
      %760 = vmatprep.subr.bf16.mxu0 0
      %761 = vmatpush2.bf16.msra.mxu0 0
      %762 = vmatprep.subr.bf16.mxu0 0
      %763 = vmatpush2.bf16.msra.mxu0 0
      %764 = vmatprep.subr.bf16.mxu0 0
      %765 = vmatpush2.bf16.msra.mxu0 0
      %766 = vmatprep.subr.bf16.mxu0 0
      %767 = vmatpush2.bf16.msra.mxu0 0
      %768 = vmatprep.subr.bf16.mxu0 0
      %769 = vmatpush2.bf16.msra.mxu0 0
      %770 = vmatprep.subr.bf16.mxu0 0
      %771 = vmatpush2.bf16.msra.mxu0 0
      %772 = vmatprep.mubr.bf16.mxu0 0
      %773 = vmatmul.mubr.bf16.gmra.mxu0 %v587
      %v774 = vpop.f32.mrf.mxu0
      %v775 = vadd.f32 %v685, %v774
      %v776 = vpop.f32.mrf.mxu0
      %v777 = vpop.f32.mrf.mxu0
      %v778 = vadd.f32 %v688, %v777
      %v779 = vpop.f32.mrf.mxu0
      %780 = vdwg.mxu0
      %v781 = vld [vmem:[#allocation2] sm:$0xe]
      %s782 = scalar_lea.vmem %s3, 128
      %v783 = vld [vmem:[%s782] sm:$0xf]
      %v784 = vld [vmem:[%s782 + $0x4] sm:$0xf]
      %v785 = vld [vmem:[%s782 + $0x8] sm:$0xf]
      %v786 = vld [vmem:[%s782 + $0xc] sm:$0xf]
      %v787 = vld [vmem:[%s782 + $0x10] sm:$0xf]
      %v788 = vld [vmem:[%s782 + $0x14] sm:$0xf]
      %v789 = vld [vmem:[%s782 + $0x18] sm:$0xf]
      %v790 = vld [vmem:[%s782 + $0x1c] sm:$0xf]
      %v791 = vld [vmem:[%s782 + $0x20] sm:$0xf]
      %v792 = vld [vmem:[%s782 + $0x24] sm:$0xf]
      %v793 = vld [vmem:[%s782 + $0x28] sm:$0xf]
      %v794 = vld [vmem:[%s782 + $0x2c] sm:$0xf]
      %v795 = vld [vmem:[%s782 + $0x30] sm:$0xf]
      %v796 = vld [vmem:[%s782 + $0x34] sm:$0xf]
      %v797 = vld [vmem:[%s782 + $0x38] sm:$0xf]
      %v798 = vld [vmem:[%s782 + $0x3c] sm:$0xf]
      %v800 = vunpack.c.l.b16 %v781
      %v801 = vpack.c.b16 %v585, %v800
      %v802 = vrot.slane %v801, 1
      %v803 = vrot.slane %v588, 1
      %v804 = vsel %vm416, %v802, %v803
      %v822 = vunpack.c.l.b16 %v783
      %v823 = vunpack.c.l.b16 %v784
      %v824 = vunpack.c.l.b16 %v785
      %v825 = vunpack.c.l.b16 %v786
      %v826 = vunpack.c.l.b16 %v787
      %v827 = vunpack.c.l.b16 %v788
      %v828 = vunpack.c.l.b16 %v789
      %v829 = vunpack.c.l.b16 %v790
      %v830 = vunpack.c.l.b16 %v791
      %v831 = vunpack.c.l.b16 %v792
      %v832 = vunpack.c.l.b16 %v793
      %v833 = vunpack.c.l.b16 %v794
      %v834 = vunpack.c.l.b16 %v795
      %v835 = vunpack.c.l.b16 %v796
      %v836 = vunpack.c.l.b16 %v797
      %v837 = vunpack.c.l.b16 %v798
      %v838 = vpack.c.b16 %v823, %v822
      %v839 = vpack.c.b16 %v825, %v824
      %v840 = vpack.c.b16 %v827, %v826
      %v841 = vpack.c.b16 %v829, %v828
      %v842 = vpack.c.b16 %v831, %v830
      %v843 = vpack.c.b16 %v833, %v832
      %v844 = vpack.c.b16 %v835, %v834
      %v845 = vpack.c.b16 %v837, %v836
      %854 = vmatprep.subr.bf16.mxu0 0
      %855 = vmatpush1.bf16.msra.mxu0 %v845
      %856 = vmatprep.subr.bf16.mxu0 0
      %857 = vmatpush1.bf16.msra.mxu0 %v844
      %858 = vmatprep.subr.bf16.mxu0 0
      %859 = vmatpush1.bf16.msra.mxu0 %v843
      %860 = vmatprep.subr.bf16.mxu0 0
      %861 = vmatpush1.bf16.msra.mxu0 %v842
      %862 = vmatprep.subr.bf16.mxu0 0
      %863 = vmatpush1.bf16.msra.mxu0 %v841
      %864 = vmatprep.subr.bf16.mxu0 0
      %865 = vmatpush1.bf16.msra.mxu0 %v840
      %866 = vmatprep.subr.bf16.mxu0 0
      %867 = vmatpush1.bf16.msra.mxu0 %v839
      %868 = vmatprep.subr.bf16.mxu0 0
      %869 = vmatpush1.bf16.msra.mxu0 %v838
      %870 = vmatprep.subr.bf16.mxu0 0
      %871 = vmatpush2.bf16.msra.mxu0 0
      %872 = vmatprep.subr.bf16.mxu0 0
      %873 = vmatpush2.bf16.msra.mxu0 0
      %874 = vmatprep.subr.bf16.mxu0 0
      %875 = vmatpush2.bf16.msra.mxu0 0
      %876 = vmatprep.subr.bf16.mxu0 0
      %877 = vmatpush2.bf16.msra.mxu0 0
      %878 = vmatprep.subr.bf16.mxu0 0
      %879 = vmatpush2.bf16.msra.mxu0 0
      %880 = vmatprep.subr.bf16.mxu0 0
      %881 = vmatpush2.bf16.msra.mxu0 0
      %882 = vmatprep.subr.bf16.mxu0 0
      %883 = vmatpush2.bf16.msra.mxu0 0
      %884 = vmatprep.subr.bf16.mxu0 0
      %885 = vmatpush2.bf16.msra.mxu0 0
      %886 = vmatprep.mubr.bf16.mxu0 0
      %887 = vmatmul.mubr.bf16.gmra.mxu0 %v804
      %v888 = vpop.f32.mrf.mxu0
      %v889 = vadd.f32 0.0, %v888
      %v890 = vpop.f32.mrf.mxu0
      %v891 = vpop.f32.mrf.mxu0
      %v892 = vadd.f32 0.0, %v891
      %v893 = vpop.f32.mrf.mxu0
      %894 = vdwg.mxu0
      %v895 = vadd.f32 %v775, %v889
      %v896 = vadd.f32 %v778, %v892
      %v897 = vld [vmem:[%s4] sm:$0x1]
      %v899 = vlaneseq
      %v900 = vshrl.u32 %v899, 7
      %v901 = vsub.s32 0, %v900
      %v902 = vrot.slane %v897, %v901
      %v904 = vadd.f32 %v895, %v902
      %v905 = vadd.f32 %v896, %v902
      %v906 = vmax.f32 %v904, 0.0
      %v907 = vmax.f32 %v905, 0.0
      %908 = vst [vmem:[%s224] sm:$0xff] %v906
      %909 = vst [vmem:[%s224 + $0x8] sm:$0xff] %v907
      %p910 = scmp.lt.s32.totalorder %s16, 1
      %s911 = scalar_select %p910, %s16, 1
      %s912 = smul.addr %s911, 2
      %s913 = smul.addr %s912, 8
      %s914 = scalar_lea.vmem %s5, %s913
      // Predicated region
      $region41: #{basic_conv_forward.1} parent=39 // pred_check
        %p915 = pneg %p144
      $region42: #{basic_conv_forward.1} parent=39 // pred_check_branch
        %917 = sbr.rel (%p915) target = $region44
      $region43: #{basic_conv_forward.1} parent=39 // pred_region
        _
      $region44: #{basic_conv_forward.1} parent=39 // pred_fallthru
        _
    $region40: #{basic_conv_forward.1} parent=5 // pred_fallthru
      _
    %p918 = scmp.le.s32.totalorder 2, %s11
    // Predicated region
    $region45: #{basic_conv_forward.1} parent=5 // pred_check
      %p919 = pneg %p918
    $region46: #{basic_conv_forward.1} parent=5 // pred_check_branch
      %921 = sbr.rel (%p919) target = $region48
    $region47: #{basic_conv_forward.1} parent=5 // pred_region
      %s922 = ssub.s32 %s11, 2
      // Predicated region
      $region49: #{basic_conv_forward.1} parent=47 // pred_check
        %p923 = pneg %p150
      $region50: #{basic_conv_forward.1} parent=47 // pred_check_branch
        %925 = sbr.rel (%p923) target = $region52
      $region51: #{basic_conv_forward.1} parent=47 // pred_region
        %p926 = scmp.lt.s32.totalorder %s17, 1
        %s927 = scalar_select %p926, %s17, 1
        %s928 = smul.addr %s927, 2
        %s929 = smul.addr %s928, 8
        %s930 = scalar_lea.vmem %s5, %s929
      $region52: #{basic_conv_forward.1} parent=47 // pred_fallthru
        _
    $region48: #{basic_conv_forward.1} parent=5 // pred_fallthru
      _
  $region6: #{basic_conv_forward.1} parent=0 // loop_footer
    %s15 = sadd.s32 1, %s11
  $region7: #{basic_conv_forward.1} parent=0 // loop_footer_branch
    %10 = sbr.rel target = $region3
  $region8: #{basic_conv_forward.1} parent=0 // loop_exit
    _

</llo_original>
